<compile_context>
chip_gen: v7x
topology: tpu7x:2x2x1
jax: 0.10.0
libtpu: 0.0.40
codegen_flags: <defaults>
</compile_context>

<pallas_src>
import jax
import jax.numpy as jnp
from jax.experimental import pallas as pl
from jax.experimental.pallas import tpu as pltpu

HIDDEN = 64


def generator_kernel(x_ref, w1_ref, b1_ref, w2_ref, b2_ref, w3t_ref, b3_ref, o_ref):
    # Layer 1: K=1 matmul is degenerate -> VPU broadcast: (TB,1)*(1,64)+(1,64) -> ReLU
    h1 = jnp.maximum(x_ref[...] * w1_ref[...] + b1_ref[...], 0.0)

    # Layer 2: 64x64 GEMM on the MXU, bf16 operands, f32 accumulation -> ReLU
    h2 = jnp.dot(h1.astype(jnp.bfloat16), w2_ref[...],
                 preferred_element_type=jnp.float32) + b2_ref[...]
    h2 = jnp.maximum(h2, 0.0)

    # Layer 3: N=1 matmul -> f32 lane reduce on VPU/XLU instead of the MXU.
    out = jnp.sum(h2 * w3t_ref[...], axis=-1, keepdims=True) + b3_ref[...]

    # TODO(synk): for very large B (100K+), fold batch into the lane dim for a lane-dense
    # output slab instead of a last-dim-1 (masked) store.
    o_ref[...] = out.astype(o_ref.dtype)


def _round_up(n, m):
    return ((n + m - 1) // m) * m


def gail_forward(x, params, *, tb_max=1024):
    """Runs GAILAgent.forward (the generator MLP) as a batch-tiled Pallas TPU kernel."""
    w1, b1, w2, b2, w3, b3 = params
    B = x.shape[0]

    # Batch tile: multiple of 8 (sublane), capped at tb_max; pad B up to a tile multiple.
    TB = min(tb_max, _round_up(B, 8))
    Bp = _round_up(B, TB)
    x_p = x if Bp == B else jnp.pad(x, ((0, Bp - B), (0, 0)))
    n_tiles = Bp // TB

    w2_bf16 = w2.astype(jnp.bfloat16)       # one-time cast; MXU is bf16-native
    w3t = w3.reshape(1, HIDDEN)             # layer-3 weights as a lane row for the reduce

    def pinned(shape):
        return pl.BlockSpec(shape, lambda i: (0, 0))

    flops = 2 * Bp * (HIDDEN + HIDDEN * HIDDEN + HIDDEN)
    bytes_accessed = (
        4 * Bp            # x (f32)
        + 4 * Bp          # out (f32)
        + 2 * HIDDEN * HIDDEN        # w2 (bf16)
        + 4 * HIDDEN * 3 + 4 * HIDDEN + 4  # w1, b1, b2, w3t, b3 (f32)
    )

    out_p = pl.pallas_call(
        generator_kernel,
        out_shape=jax.ShapeDtypeStruct((Bp, 1), jnp.float32),
        grid=(n_tiles,),
        in_specs=[
            pl.BlockSpec((TB, 1), lambda i: (i, 0)),   # x tile
            pinned((1, HIDDEN)),                       # w1 (1,64)
            pinned((1, HIDDEN)),                       # b1
            pinned((HIDDEN, HIDDEN)),                  # w2 (bf16)
            pinned((1, HIDDEN)),                       # b2
            pinned((1, HIDDEN)),                       # w3^T row
            pinned((1, 1)),                            # b3
        ],
        out_specs=pl.BlockSpec((TB, 1), lambda i: (i, 0)),
        compiler_params=pltpu.CompilerParams(
            dimension_semantics=("parallel",)),        # megacore / v7x 2-TC sharding
        cost_estimate=pl.CostEstimate(
            flops=flops, transcendentals=0, bytes_accessed=bytes_accessed),
    )(x_p, w1, b1, w2_bf16, b2, w3t, b3)

    return out_p[:B]


def init_generator_params(key):
    """Deterministic init matching Linear(1,64), Linear(64,64), Linear(64,1).
       PyTorch-style U(-1/sqrt(fan_in), 1/sqrt(fan_in))."""
    keys = jax.random.split(key, 6)

    def uniform(k, shape, fan_in):
        bound = 1.0 / jnp.sqrt(jnp.float32(fan_in))
        return jax.random.uniform(k, shape, jnp.float32, -bound, bound)

    w1 = uniform(keys[0], (1, 64), 1)       # stored (in, out)
    b1 = uniform(keys[1], (1, 64), 1)
    w2 = uniform(keys[2], (64, 64), 64)
    b2 = uniform(keys[3], (1, 64), 64)
    w3 = uniform(keys[4], (64, 1), 64)
    b3 = uniform(keys[5], (1, 1), 64)
    return (w1, b1, w2, b2, w3, b3)


def gail_forward_ref(x, params):
    """Pure-JAX f32 reference of the same MLP for verification."""
    w1, b1, w2, b2, w3, b3 = params
    h1 = jnp.maximum(x @ w1 + b1, 0.0)
    h2 = jnp.maximum(h1 @ w2 + b2, 0.0)
    return h2 @ w3 + b3


# TODO(synk): train_step (Adam updates, BCE/GAN losses, discriminator training loop)
# is an optimization procedure, not a forward pass — not translated to a kernel.

if __name__ == "__main__":
    key = jax.random.PRNGKey(0)
    k_param, k_x1, k_x2 = jax.random.split(key, 3)

    params = init_generator_params(k_param)

    # Small batch consistent with nn.Linear(1, 64) input: (B, 1)
    B = 8
    x = jax.random.normal(k_x1, (B, 1), dtype=jnp.float32)
    out = jax.block_until_ready(gail_forward(x, params))
    ref = gail_forward_ref(x, params)
    assert out.shape == (B, 1)
    assert jnp.allclose(out, ref, atol=3e-2, rtol=3e-2)  # bf16 MXU path on layer 2

    # Also exercise multi-tile + padding path (still small / fast).
    B2 = 528
    x2 = jax.random.normal(k_x2, (B2, 1), dtype=jnp.float32)
    out2 = jax.block_until_ready(gail_forward(x2, params, tb_max=128))
    ref2 = gail_forward_ref(x2, params)
    assert out2.shape == (B2, 1)
    assert jnp.allclose(out2, ref2, atol=3e-2, rtol=3e-2)

    print("KERNEL_OK")
</pallas_src>

<mosaic_0001>
module attributes {stable_mosaic.version = 11 : i64} {
  func.func @generator_kernel(%arg0: i32, %arg1: memref<8x1xf32, #tpu.memory_space<vmem>>, %arg2: memref<1x64xf32, #tpu.memory_space<vmem>>, %arg3: memref<1x64xf32, #tpu.memory_space<vmem>>, %arg4: memref<64x64xbf16, #tpu.memory_space<vmem>>, %arg5: memref<1x64xf32, #tpu.memory_space<vmem>>, %arg6: memref<1x64xf32, #tpu.memory_space<vmem>>, %arg7: memref<1x1xf32, #tpu.memory_space<vmem>>, %arg8: memref<8x1xf32, #tpu.memory_space<vmem>>) attributes {dimension_semantics = [#tpu.dimension_semantics<parallel>], iteration_bounds = array<i64: 1>, scalar_prefetch = 0 : i64, scratch_operands = 0 : i64, tpu.core_type = #tpu.core_type<tc>, window_params = [{transform_indices = @transform_0, window_bounds = array<i64: 8, 1>}, {pipeline_mode = #tpu.pipeline_mode<synchronous>, transform_indices = @transform_1, window_bounds = array<i64: 1, 64>}, {pipeline_mode = #tpu.pipeline_mode<synchronous>, transform_indices = @transform_2, window_bounds = array<i64: 1, 64>}, {pipeline_mode = #tpu.pipeline_mode<synchronous>, transform_indices = @transform_3, window_bounds = array<i64: 64, 64>}, {pipeline_mode = #tpu.pipeline_mode<synchronous>, transform_indices = @transform_4, window_bounds = array<i64: 1, 64>}, {pipeline_mode = #tpu.pipeline_mode<synchronous>, transform_indices = @transform_5, window_bounds = array<i64: 1, 64>}, {pipeline_mode = #tpu.pipeline_mode<synchronous>, transform_indices = @transform_6, window_bounds = array<i64: 1, 1>}, {transform_indices = @transform_7, window_bounds = array<i64: 8, 1>}]} {
    %c0 = arith.constant 0 : index
    %c0_0 = arith.constant 0 : index
    %0 = vector.load %arg1[%c0, %c0_0] : memref<8x1xf32, #tpu.memory_space<vmem>>, vector<8x1xf32>
    %c0_1 = arith.constant 0 : index
    %c0_2 = arith.constant 0 : index
    %1 = vector.load %arg2[%c0_1, %c0_2] : memref<1x64xf32, #tpu.memory_space<vmem>>, vector<1x64xf32>
    %2 = vector.broadcast %0 : vector<8x1xf32> to vector<8x64xf32>
    %3 = vector.broadcast %1 : vector<1x64xf32> to vector<8x64xf32>
    %4 = arith.mulf %2, %3 : vector<8x64xf32>
    %c0_3 = arith.constant 0 : index
    %c0_4 = arith.constant 0 : index
    %5 = vector.load %arg3[%c0_3, %c0_4] : memref<1x64xf32, #tpu.memory_space<vmem>>, vector<1x64xf32>
    %6 = vector.broadcast %5 : vector<1x64xf32> to vector<8x64xf32>
    %7 = arith.addf %4, %6 : vector<8x64xf32>
    %cst = arith.constant 0.000000e+00 : f32
    %8 = vector.broadcast %cst : f32 to vector<8x64xf32>
    %9 = arith.maximumf %7, %8 : vector<8x64xf32>
    %10 = arith.truncf %9 : vector<8x64xf32> to vector<8x64xbf16>
    %c0_5 = arith.constant 0 : index
    %c0_6 = arith.constant 0 : index
    %11 = vector.load %arg4[%c0_5, %c0_6] : memref<64x64xbf16, #tpu.memory_space<vmem>>, vector<64x64xbf16>
    %cst_7 = arith.constant dense<0.000000e+00> : vector<8x64xf32>
    %12 = tpu.matmul %10, %11, %cst_7 {dimension_numbers = #tpu.dot_dimension_numbers<[1], [0], [0], [1], [0, 0, 1, 1], [], []>} : vector<8x64xbf16>, vector<64x64xbf16>, vector<8x64xf32> -> vector<8x64xf32>
    %c0_8 = arith.constant 0 : index
    %c0_9 = arith.constant 0 : index
    %13 = vector.load %arg5[%c0_8, %c0_9] : memref<1x64xf32, #tpu.memory_space<vmem>>, vector<1x64xf32>
    %14 = vector.broadcast %13 : vector<1x64xf32> to vector<8x64xf32>
    %15 = arith.addf %12, %14 : vector<8x64xf32>
    %cst_10 = arith.constant 0.000000e+00 : f32
    %16 = vector.broadcast %cst_10 : f32 to vector<8x64xf32>
    %17 = arith.maximumf %15, %16 : vector<8x64xf32>
    %c0_11 = arith.constant 0 : index
    %c0_12 = arith.constant 0 : index
    %18 = vector.load %arg6[%c0_11, %c0_12] : memref<1x64xf32, #tpu.memory_space<vmem>>, vector<1x64xf32>
    %19 = vector.broadcast %18 : vector<1x64xf32> to vector<8x64xf32>
    %20 = arith.mulf %17, %19 : vector<8x64xf32>
    %cst_13 = arith.constant dense<0.000000e+00> : vector<8xf32>
    %21 = vector.multi_reduction <add>, %20, %cst_13 [1] : vector<8x64xf32> to vector<8xf32>
    %22 = vector.shape_cast %21 : vector<8xf32> to vector<8x1xf32>
    %c0_14 = arith.constant 0 : index
    %c0_15 = arith.constant 0 : index
    %23 = vector.load %arg7[%c0_14, %c0_15] : memref<1x1xf32, #tpu.memory_space<vmem>>, vector<1x1xf32>
    %24 = vector.broadcast %23 : vector<1x1xf32> to vector<8x1xf32>
    %25 = arith.addf %22, %24 : vector<8x1xf32>
    %c0_16 = arith.constant 0 : index
    %c0_17 = arith.constant 0 : index
    %26 = vector.load %arg8[%c0_16, %c0_17] : memref<8x1xf32, #tpu.memory_space<vmem>>, vector<8x1xf32>
    tpu.vector_store %arg8[%c0_16, %c0_17], %25 {strides = array<i32>} : memref<8x1xf32, #tpu.memory_space<vmem>>, vector<8x1xf32>,
    return
  }
  func.func @transform_0(%arg0: i32) -> (i32, i32) {
    %c0_i32 = arith.constant 0 : i32
    %c0_i32_0 = arith.constant 0 : i32
    return %arg0, %c0_i32 : i32, i32
  }
  func.func @transform_1(%arg0: i32) -> (i32, i32) {
    %c0_i32 = arith.constant 0 : i32
    %c0_i32_0 = arith.constant 0 : i32
    %c0_i32_1 = arith.constant 0 : i32
    return %c0_i32, %c0_i32_0 : i32, i32
  }
  func.func @transform_2(%arg0: i32) -> (i32, i32) {
    %c0_i32 = arith.constant 0 : i32
    %c0_i32_0 = arith.constant 0 : i32
    %c0_i32_1 = arith.constant 0 : i32
    return %c0_i32, %c0_i32_0 : i32, i32
  }
  func.func @transform_3(%arg0: i32) -> (i32, i32) {
    %c0_i32 = arith.constant 0 : i32
    %c0_i32_0 = arith.constant 0 : i32
    %c0_i32_1 = arith.constant 0 : i32
    return %c0_i32, %c0_i32_0 : i32, i32
  }
  func.func @transform_4(%arg0: i32) -> (i32, i32) {
    %c0_i32 = arith.constant 0 : i32
    %c0_i32_0 = arith.constant 0 : i32
    %c0_i32_1 = arith.constant 0 : i32
    return %c0_i32, %c0_i32_0 : i32, i32
  }
  func.func @transform_5(%arg0: i32) -> (i32, i32) {
    %c0_i32 = arith.constant 0 : i32
    %c0_i32_0 = arith.constant 0 : i32
    %c0_i32_1 = arith.constant 0 : i32
    return %c0_i32, %c0_i32_0 : i32, i32
  }
  func.func @transform_6(%arg0: i32) -> (i32, i32) {
    %c0_i32 = arith.constant 0 : i32
    %c0_i32_0 = arith.constant 0 : i32
    %c0_i32_1 = arith.constant 0 : i32
    return %c0_i32, %c0_i32_0 : i32, i32
  }
  func.func @transform_7(%arg0: i32) -> (i32, i32) {
    %c0_i32 = arith.constant 0 : i32
    %c0_i32_0 = arith.constant 0 : i32
    return %arg0, %c0_i32 : i32, i32
  }
}

</mosaic_0001>

<llo_original>
// kernel: tpu_custom_call.1
$region0: #{tpu_custom_call.1}
  #allocation0 [shape = 'u32[]', space=smem, size = 0x4, offset = 0x4, fixed_abs, tag = 'smem constant byte address 0x4 - core index']
  #allocation1 [shape = 'u32[144,128]{1,0:T(1,128)}', space=vmem, size = 0x12000, scoped, tag = 'internal scratch']
  #allocation2 [shape = 'f32[1,1]{1,0:T(1,128)S(1)}', space=vmem, size = 0x200, scoped, tag = 'scoped memory for tpu_custom_call.1']
  %s0 = inlined_call_operand.vmem [shape: f32[8,1], index: 0, kind: input, shape index: {}]
  %s1 = inlined_call_operand.vmem [shape: f32[1,64], index: 1, kind: input, shape index: {}]
  %s2 = inlined_call_operand.vmem [shape: f32[1,64], index: 2, kind: input, shape index: {}]
  %s3 = inlined_call_operand.hbm [shape: bf16[64,64], index: 3, kind: input, shape index: {}]
  %s4 = inlined_call_operand.vmem [shape: f32[1,64], index: 4, kind: input, shape index: {}]
  %s5 = inlined_call_operand.vmem [shape: f32[1,64], index: 5, kind: input, shape index: {}]
  %s6 = inlined_call_operand.<no memory space> [shape: f32[1,1], index: 6, kind: input, shape index: {}]
  %s7 = inlined_call_operand.vmem [shape: f32[8,1], index: 7, kind: output, shape index: {}]
  %s8 = sld [smem:[#allocation0]]
  $region42: #{tpu_custom_call.1} parent=0
    _
  %s10 = ssub.s32 1, %s8
  %s11 = scalar_select 0, %s10, %s8
  %v12 = vstv %s6
  %13 = vst [vmem:[#allocation2] sm:$0x1] %v12
  $region1: #{tpu_custom_call.1} parent=0
    #allocation3 [shape = 'u8[16384]{0}', space=vmem, size = 0x4000, scoped, tag = 'input window, operand 3, single buffered']
    #allocation4 [shape = 's32[1]{0}', space=sflag, size = 0x4, scoped, tag = 'scoped memory for tpu_custom_call.1']
    %14 = vsyncpa [#allocation4], 0
    // Predicated region
    $region2: #{tpu_custom_call.1} parent=1 // pred_check
      _
    $region3: #{tpu_custom_call.1} parent=1 // pred_check_branch
      %16 = sbr.rel (0) target = $region5
    $region4: #{tpu_custom_call.1} parent=1 // pred_region
      _
    $region5: #{tpu_custom_call.1} parent=1 // pred_fallthru
      _
    // Predicated region
    $region6: #{tpu_custom_call.1} parent=1 // pred_check
      _
    $region7: #{tpu_custom_call.1} parent=1 // pred_check_branch
      %18 = sbr.rel (0) target = $region9
    $region8: #{tpu_custom_call.1} parent=1 // pred_region
      _
    $region9: #{tpu_custom_call.1} parent=1 // pred_fallthru
      _
    // Predicated region
    $region10: #{tpu_custom_call.1} parent=1 // pred_check
      _
    $region11: #{tpu_custom_call.1} parent=1 // pred_check_branch
      %20 = sbr.rel (0) target = $region13
    $region12: #{tpu_custom_call.1} parent=1 // pred_region
      _
    $region13: #{tpu_custom_call.1} parent=1 // pred_fallthru
      _
    // Predicated region
    $region14: #{tpu_custom_call.1} parent=1 // pred_check
      _
    $region15: #{tpu_custom_call.1} parent=1 // pred_check_branch
      %22 = sbr.rel (0) target = $region17
    $region16: #{tpu_custom_call.1} parent=1 // pred_region
      %s24 = ssub.s32 512, 512
      %25 = vsyncadd [#allocation4], %s24
      %s26 = sshll.u32 [#allocation3], 4
      %s27 = int_to_ptr.vmem [resolvable:$true] %s26
      %32 = dma.hbm_to_vmem [thread:$0]  %s3, 512, %s27, [#allocation4], 64, 64, 4
    $region17: #{tpu_custom_call.1} parent=1 // pred_fallthru
      _
    // Predicated region
    $region18: #{tpu_custom_call.1} parent=1 // pred_check
      _
    $region19: #{tpu_custom_call.1} parent=1 // pred_check_branch
      %34 = sbr.rel (0) target = $region21
    $region20: #{tpu_custom_call.1} parent=1 // pred_region
      _
    $region21: #{tpu_custom_call.1} parent=1 // pred_fallthru
      _
    // Predicated region
    $region22: #{tpu_custom_call.1} parent=1 // pred_check
      _
    $region23: #{tpu_custom_call.1} parent=1 // pred_check_branch
      %36 = sbr.rel (0) target = $region25
    $region24: #{tpu_custom_call.1} parent=1 // pred_region
      _
    $region25: #{tpu_custom_call.1} parent=1 // pred_fallthru
      _
    // Predicated region
    $region26: #{tpu_custom_call.1} parent=1 // pred_check
      _
    $region27: #{tpu_custom_call.1} parent=1 // pred_check_branch
      %38 = sbr.rel (0) target = $region29
    $region28: #{tpu_custom_call.1} parent=1 // pred_region
      _
    $region29: #{tpu_custom_call.1} parent=1 // pred_fallthru
      _
    // Predicated region
    $region30: #{tpu_custom_call.1} parent=1 // pred_check
      _
    $region31: #{tpu_custom_call.1} parent=1 // pred_check_branch
      %40 = sbr.rel (0) target = $region33
    $region32: #{tpu_custom_call.1} parent=1 // pred_region
      %41 = dma.done [#allocation4], 512
    $region33: #{tpu_custom_call.1} parent=1 // pred_fallthru
      _
    %v43 = vld [vmem:[%s0] sm:$0xff]
    %v44 = vld [vmem:[%s1] sm:$0x1]
    %46 = vset.pattern.permute.xlu0 0
    %47 = vperm.xlu0 %46, %v43
    %v48 = vpop.permute.xlu0 %47
    %v51 = vlaneseq
    %v52 = vshrl.u32 %v51, 7
    %v53 = vsub.s32 0, %v52
    %v54 = vrot.slane %v44, %v53
    %v56 = vmul.f32 %v48, %v54
    %v57 = vld [vmem:[%s2] sm:$0x1]
    %v59 = vlaneseq
    %v60 = vshrl.u32 %v59, 7
    %v61 = vsub.s32 0, %v60
    %v62 = vrot.slane %v57, %v61
    %v64 = vadd.f32 %v56, %v62
    %v65 = vmax.f32 %v64, 0.0
    %v66 = vpack.c.bf16 %v65, %v65
    %v67 = vld [vmem:[#allocation3] sm:$0xf]
    %v68 = vld [vmem:[#allocation3 + $0x4] sm:$0xf]
    %v69 = vld [vmem:[#allocation3 + $0x8] sm:$0xf]
    %v70 = vld [vmem:[#allocation3 + $0xc] sm:$0xf]
    %v71 = vld [vmem:[#allocation3 + $0x10] sm:$0xf]
    %v72 = vld [vmem:[#allocation3 + $0x14] sm:$0xf]
    %v73 = vld [vmem:[#allocation3 + $0x18] sm:$0xf]
    %v74 = vld [vmem:[#allocation3 + $0x1c] sm:$0xf]
    %v75 = vld [vmem:[%s4] sm:$0x1]
    %v77 = vlaneseq
    %v78 = vshrl.u32 %v77, 7
    %v79 = vsub.s32 0, %v78
    %v80 = vrot.slane %v75, %v79
    %v90 = vunpack.c.l.b16 %v67
    %v91 = vunpack.c.l.b16 %v68
    %v92 = vunpack.c.l.b16 %v69
    %v93 = vunpack.c.l.b16 %v70
    %v94 = vunpack.c.l.b16 %v71
    %v95 = vunpack.c.l.b16 %v72
    %v96 = vunpack.c.l.b16 %v73
    %v97 = vunpack.c.l.b16 %v74
    %v98 = vpack.c.b16 %v91, %v90
    %v99 = vpack.c.b16 %v93, %v92
    %v100 = vpack.c.b16 %v95, %v94
    %v101 = vpack.c.b16 %v97, %v96
    %vm106 = vcmask 523264
    %v108 = vsel %vm106, %v66, 0
    %110 = vmatprep.subr.bf16.mxu0 0
    %111 = vmatpush1.bf16.msra.mxu0 %v98
    %112 = vmatprep.subr.bf16.mxu0 0
    %113 = vmatpush1.bf16.msra.mxu0 %v99
    %114 = vmatprep.subr.bf16.mxu0 0
    %115 = vmatpush1.bf16.msra.mxu0 %v100
    %116 = vmatprep.subr.bf16.mxu0 0
    %117 = vmatpush1.bf16.msra.mxu0 %v101
    %118 = vmatprep.subr.bf16.mxu0 0
    %119 = vmatpush1.bf16.msra.mxu0 0
    %120 = vmatprep.subr.bf16.mxu0 0
    %121 = vmatpush1.bf16.msra.mxu0 0
    %122 = vmatprep.subr.bf16.mxu0 0
    %123 = vmatpush1.bf16.msra.mxu0 0
    %124 = vmatprep.subr.bf16.mxu0 0
    %125 = vmatpush1.bf16.msra.mxu0 0
    %126 = vmatprep.subr.bf16.mxu0 0
    %127 = vmatpush1.bf16.msra.mxu0 0
    %128 = vmatprep.subr.bf16.mxu0 0
    %129 = vmatpush1.bf16.msra.mxu0 0
    %130 = vmatprep.subr.bf16.mxu0 0
    %131 = vmatpush1.bf16.msra.mxu0 0
    %132 = vmatprep.subr.bf16.mxu0 0
    %133 = vmatpush1.bf16.msra.mxu0 0
    %134 = vmatprep.subr.bf16.mxu0 0
    %135 = vmatpush1.bf16.msra.mxu0 0
    %136 = vmatprep.subr.bf16.mxu0 0
    %137 = vmatpush1.bf16.msra.mxu0 0
    %138 = vmatprep.subr.bf16.mxu0 0
    %139 = vmatpush1.bf16.msra.mxu0 0
    %140 = vmatprep.subr.bf16.mxu0 0
    %141 = vmatpush1.bf16.msra.mxu0 0
    %142 = vmatprep.mubr.bf16.mxu0 0
    %143 = vmatmul.mubr.bf16.gmra.mrb[0].mxu0 %v108
    %v144 = vpop.f32.mrb[0].mxu0
    %v145 = vadd.f32 %v80, %v144
    %v146 = vpop.f32.mrb[0].mxu0
    %v147 = vpop.f32.mrb[0].mxu0
    %v148 = vpop.f32.mrb[0].mxu0
    %149 = vdwg.mxu0
    %v150 = vmax.f32 %v145, 0.0
    %v151 = vld [vmem:[%s5] sm:$0x1]
    %v153 = vlaneseq
    %v154 = vshrl.u32 %v153, 7
    %v155 = vsub.s32 0, %v154
    %v156 = vrot.slane %v151, %v155
    %v158 = vmul.f32 %v150, %v156
    %v159 = vsel %vm106, %v158, 0.0
    %160 = vadd.xlane.f32.xlu0 %v159
    %v161 = vpop.xlane.xlu0 %160
    %v162 = vld [vmem:[#allocation2] sm:$0x1]
    %v164 = vlaneseq
    %v165 = vshrl.u32 %v164, 7
    %v166 = vsub.s32 0, %v165
    %v167 = vrot.slane %v162, %v166
    %v169 = vadd.f32 %v161, %v167
    %vm170 = vcmask 7168
    %171 = vst.msk [vmem:[%s7] sm:$0xff] %vm170, %v169
    // Predicated region
    $region34: #{tpu_custom_call.1} parent=1 // pred_check
      _
    $region35: #{tpu_custom_call.1} parent=1 // pred_check_branch
      %173 = sbr.rel (0) target = $region37
    $region36: #{tpu_custom_call.1} parent=1 // pred_region
      _
    $region37: #{tpu_custom_call.1} parent=1 // pred_fallthru
      _
    // Predicated region
    $region38: #{tpu_custom_call.1} parent=1 // pred_check
      _
    $region39: #{tpu_custom_call.1} parent=1 // pred_check_branch
      %175 = sbr.rel (0) target = $region41
    $region40: #{tpu_custom_call.1} parent=1 // pred_region
      _
    $region41: #{tpu_custom_call.1} parent=1 // pred_fallthru
      _
    %176 = vsyncpa [#allocation4], 1

</llo_original>
